<compile_context>
chip_gen: v5e
topology: v5e:2x2
jax: 0.10.0
libtpu: 0.0.40
codegen_flags: <defaults>
</compile_context>

<pallas_src>
import functools

import jax
import jax.numpy as jnp
from jax.experimental import pallas as pl
from jax.experimental.pallas import tpu as pltpu


_VMEM_BUDGET_BYTES = 24 * 1024 * 1024   # tile-sizing budget (double-buffered I/O)
_VMEM_LIMIT_BYTES = 48 * 1024 * 1024    # explicit scoped-VMEM limit (fits v7x's 64 MiB)
_TARGET_ROWS = 512                      # target output rows per grid step


# ---------------------------------------------------------------------------
# Kernels
# ---------------------------------------------------------------------------
def _fused_merge_kernel(x_ref, w0_ref, w1_ref, b_ref, o_ref, *, eps, inv_4c):
    """Fused 2x2 gather + LayerNorm(4C) + Linear(4C->2C, no bias) on one tile.

    x_ref : (tr, 2, Wc, 2C)  pre-merge rows; dim 1 is hh (even/odd source row)
    w0_ref: (2C, 2N)         folded weight rows for the hh=0 slab ([x0 | x2])
    w1_ref: (2C, 2N)         folded weight rows for the hh=1 slab ([x1 | x3])
    b_ref : (1, 2N)          beta @ W^T  (f32)
    o_ref : (tr*Wc, 2N)
    """
    x = x_ref[...]
    s0 = x[:, 0].astype(jnp.float32)          # (tr, Wc, 2C) = [x0 | x2]
    s1 = x[:, 1].astype(jnp.float32)          # (tr, Wc, 2C) = [x1 | x3]

    # LayerNorm statistics over the combined 4C group (biased var, f32, torch-like).
    mean = (jnp.sum(s0, -1, keepdims=True) + jnp.sum(s1, -1, keepdims=True)) * inv_4c
    d0 = s0 - mean
    d1 = s1 - mean
    var = (jnp.sum(d0 * d0, -1, keepdims=True)
           + jnp.sum(d1 * d1, -1, keepdims=True)) * inv_4c
    inv = jax.lax.rsqrt(var + eps)            # (tr, Wc, 1)

    tr, wc, two_c = d0.shape
    cdt = w0_ref.dtype
    # Reshape is a layout no-op (Wc % 8 == 0, 2C % 128 == 0 on this path);
    # cast to the compute dtype (bf16) only for the MXU.
    n0 = d0.reshape(tr * wc, two_c).astype(cdt)
    n1 = d1.reshape(tr * wc, two_c).astype(cdt)

    y = jnp.dot(n0, w0_ref[...], preferred_element_type=jnp.float32)
    y = y + jnp.dot(n1, w1_ref[...], preferred_element_type=jnp.float32)
    # Per-row 1/std is linear through the matmul -> apply on the (rows, 2N)
    # output instead of the (rows, 4C) inputs (half the VPU multiplies).
    y = y * inv.reshape(tr * wc, 1) + b_ref[...].astype(jnp.float32)
    o_ref[...] = y.astype(o_ref.dtype)


def _ln_linear_kernel(x_ref, w_ref, b_ref, o_ref, *, eps, inv_4c):
    """Fallback: LayerNorm(4C) + Linear on a pre-gathered (tm, 4C) row tile."""
    x = x_ref[...].astype(jnp.float32)
    mean = jnp.sum(x, -1, keepdims=True) * inv_4c
    d = x - mean
    var = jnp.sum(d * d, -1, keepdims=True) * inv_4c
    inv = jax.lax.rsqrt(var + eps)
    y = jnp.dot(d.astype(w_ref.dtype), w_ref[...], preferred_element_type=jnp.float32)
    y = y * inv + b_ref[...].astype(jnp.float32)
    o_ref[...] = y.astype(o_ref.dtype)


# ---------------------------------------------------------------------------
# One-time parameter preparation (transpose / fold / permute / cast)
# ---------------------------------------------------------------------------
def prepare_patch_merging_params(gamma, beta, w_reduction, *,
                                 compute_dtype=jnp.bfloat16):
    """gamma, beta: (4C,); w_reduction: (2C, 4C) = nn.Linear(4C,2C,bias=False).weight."""
    four_c = gamma.shape[0]
    C = four_c // 4
    w_t = jnp.asarray(w_reduction, jnp.float32).T                 # (4C, 2N)
    w_fold = jnp.asarray(gamma, jnp.float32)[:, None] * w_t       # gamma folded in
    bias = (jnp.asarray(beta, jnp.float32) @ w_t)[None, :]        # (1, 2N)
    # PyTorch concat order: [x0, x1, x2, x3] = (h0w0, h1w0, h0w1, h1w1).
    # The fused kernel's hh=0 slab carries [x0 | x2], hh=1 carries [x1 | x3];
    # permute weight rows instead of shuffling activations.
    w0 = jnp.concatenate([w_fold[0:C], w_fold[2 * C:3 * C]], 0).astype(compute_dtype)
    w1 = jnp.concatenate([w_fold[C:2 * C], w_fold[3 * C:4 * C]], 0).astype(compute_dtype)
    return {
        "w0": w0,                                # (2C, 2N)  fused path, hh=0 slab
        "w1": w1,                                # (2C, 2N)  fused path, hh=1 slab
        "w_cat": w_fold.astype(compute_dtype),   # (4C, 2N)  fallback path
        "bias": bias,                            # (1, 2N)   f32
    }


def _pick_rows(n, target, multiple):
    """Row tile: <= target, multiple of `multiple` (or == n), >= 2 grid steps."""
    if n <= multiple:
        return n
    t = min(target, n)
    if t >= n:                       # keep at least 2 grid steps (v7x megacore)
        t = -(-n // 2)
    t = max(multiple, (t // multiple) * multiple)
    return min(t, n)


# ---------------------------------------------------------------------------
# Forward
# ---------------------------------------------------------------------------
def patch_merging_forward(x, H, W, params, *, eps=1e-5, target_rows=_TARGET_ROWS):
    """
    x: (B, H*W, C) channel-last sequence (as in the PyTorch module).
    params: output of prepare_patch_merging_params for this layer.
    returns: (B, ceil(H/2)*ceil(W/2), 2*C)
    """
    B, L, C = x.shape
    assert L == H * W, "input feature has wrong size"
    two_c = 2 * C
    four_c = 4 * C
    two_n = params["w0"].shape[1]

    xs = x.reshape(B, H, W, C)
    if (H % 2) or (W % 2):
        xs = jnp.pad(xs, ((0, 0), (0, H % 2), (0, W % 2), (0, 0)))
    Hp, Wp = H + H % 2, W + W % 2
    Hc, Wc = Hp // 2, Wp // 2
    R = B * Hc                  # number of merged row-pairs
    M = R * Wc                  # number of merged tokens
    out_dtype = x.dtype

    x_itemsize = jnp.dtype(x.dtype).itemsize
    out_itemsize = jnp.dtype(out_dtype).itemsize
    w_itemsize = jnp.dtype(params["w0"].dtype).itemsize

    compiler_params = pltpu.CompilerParams(
        dimension_semantics=("parallel",),
        vmem_limit_bytes=_VMEM_LIMIT_BYTES)

    fused_ok = (Wc % 8 == 0) and (two_c % 128 == 0) and (two_n % 128 == 0)

    if fused_ok:
        # Pure view: (B, Hp, Wp, C) -> (B*Hp/2, 2, Wp/2, 2C); no HBM gather.
        xv = xs.reshape(R, 2, Wc, two_c)
        tile_r = _pick_rows(R, max(1, target_rows // Wc), 1)

        w_bytes = 2 * two_c * two_n * w_itemsize + two_n * 4

        def vmem_est(tr):
            x_blk = tr * 2 * Wc * two_c * x_itemsize
            o_blk = tr * Wc * two_n * out_itemsize
            return 2 * (x_blk + o_blk + w_bytes)

        while tile_r > 1 and vmem_est(tile_r) > _VMEM_BUDGET_BYTES:
            tile_r = -(-tile_r // 2)

        grid = (-(-R // tile_r),)
        kernel = functools.partial(_fused_merge_kernel, eps=eps, inv_4c=1.0 / four_c)
        out_flat = pl.pallas_call(
            kernel,
            out_shape=jax.ShapeDtypeStruct((M, two_n), out_dtype),
            grid=grid,
            in_specs=[
                pl.BlockSpec((tile_r, 2, Wc, two_c), lambda i: (i, 0, 0, 0)),
                pl.BlockSpec((two_c, two_n), lambda i: (0, 0)),
                pl.BlockSpec((two_c, two_n), lambda i: (0, 0)),
                pl.BlockSpec((1, two_n), lambda i: (0, 0)),
            ],
            out_specs=pl.BlockSpec((tile_r * Wc, two_n), lambda i: (i, 0)),
            compiler_params=compiler_params,
        )(xv, params["w0"], params["w1"], params["bias"])
    else:
        # Fallback: gather in the wrapper (extra HBM round trip) + 2D kernel.
        x0 = xs[:, 0::2, 0::2, :]
        x1 = xs[:, 1::2, 0::2, :]
        x2 = xs[:, 0::2, 1::2, :]
        x3 = xs[:, 1::2, 1::2, :]
        xcat = jnp.concatenate([x0, x1, x2, x3], -1).reshape(M, four_c)

        tile_m = _pick_rows(M, target_rows, 8)

        def vmem_est(tm):
            return 2 * (tm * four_c * x_itemsize + tm * two_n * out_itemsize
                        + four_c * two_n * w_itemsize + two_n * 4)

        while tile_m > 8 and vmem_est(tile_m) > _VMEM_BUDGET_BYTES:
            tile_m = max(8, (tile_m // 2 // 8) * 8)

        grid = (-(-M // tile_m),)
        kernel = functools.partial(_ln_linear_kernel, eps=eps, inv_4c=1.0 / four_c)
        out_flat = pl.pallas_call(
            kernel,
            out_shape=jax.ShapeDtypeStruct((M, two_n), out_dtype),
            grid=grid,
            in_specs=[
                pl.BlockSpec((tile_m, four_c), lambda i: (i, 0)),
                pl.BlockSpec((four_c, two_n), lambda i: (0, 0)),
                pl.BlockSpec((1, two_n), lambda i: (0, 0)),
            ],
            out_specs=pl.BlockSpec((tile_m, two_n), lambda i: (i, 0)),
            compiler_params=compiler_params,
        )(xcat, params["w_cat"], params["bias"])

    return out_flat.reshape(B, Hc * Wc, two_n)


# ---------------------------------------------------------------------------
# Pure-JAX reference (PyTorch module semantics, all f32)
# ---------------------------------------------------------------------------
def _reference_forward(x, H, W, gamma, beta, w_reduction, eps=1e-5):
    B, L, C = x.shape
    xs = x.reshape(B, H, W, C).astype(jnp.float32)
    if H % 2 or W % 2:
        xs = jnp.pad(xs, ((0, 0), (0, H % 2), (0, W % 2), (0, 0)))
    x0 = xs[:, 0::2, 0::2, :]
    x1 = xs[:, 1::2, 0::2, :]
    x2 = xs[:, 0::2, 1::2, :]
    x3 = xs[:, 1::2, 1::2, :]
    xc = jnp.concatenate([x0, x1, x2, x3], -1).reshape(B, -1, 4 * C)
    mean = jnp.mean(xc, -1, keepdims=True)
    var = jnp.mean((xc - mean) ** 2, -1, keepdims=True)
    xn = (xc - mean) * jax.lax.rsqrt(var + eps) * gamma + beta
    return xn @ jnp.asarray(w_reduction, jnp.float32).T


if __name__ == "__main__":
    key = jax.random.PRNGKey(0)
    keys = jax.random.split(key, 8)

    fwd = jax.jit(patch_merging_forward, static_argnums=(1, 2))

    # --- case 1: fused fast path (even spatial, 2C multiple of 128) -------
    B, C, H, W = 2, 64, 16, 16
    x = jax.random.normal(keys[0], (B, H * W, C), dtype=jnp.float32)
    w_red = jax.random.normal(keys[1], (2 * C, 4 * C), jnp.float32) / jnp.sqrt(4.0 * C)
    gamma = 1.0 + 0.01 * jax.random.normal(keys[2], (4 * C,), jnp.float32)
    beta = 0.01 * jax.random.normal(keys[3], (4 * C,), jnp.float32)

    params = prepare_patch_merging_params(gamma, beta, w_red,
                                          compute_dtype=jnp.bfloat16)
    out = jax.block_until_ready(fwd(x, H, W, params))
    ref = _reference_forward(x, H, W, gamma, beta, w_red)
    assert out.shape == (B, (H // 2) * (W // 2), 2 * C), out.shape
    # bf16 matmul operands (f32 LN stats + f32 accumulation) vs f32 reference.
    assert jnp.allclose(out, ref, atol=3e-2, rtol=3e-2), \
        float(jnp.max(jnp.abs(out - ref)))

    # --- case 2: fallback path (odd H/W padding, small channel count) ----
    B2, C2, H2, W2 = 1, 16, 7, 9
    x2 = jax.random.normal(keys[4], (B2, H2 * W2, C2), dtype=jnp.float32)
    w_red2 = jax.random.normal(keys[5], (2 * C2, 4 * C2), jnp.float32) / jnp.sqrt(4.0 * C2)
    gamma2 = 1.0 + 0.01 * jax.random.normal(keys[6], (4 * C2,), jnp.float32)
    beta2 = 0.01 * jax.random.normal(keys[7], (4 * C2,), jnp.float32)

    params2 = prepare_patch_merging_params(gamma2, beta2, w_red2,
                                           compute_dtype=jnp.bfloat16)
    out2 = jax.block_until_ready(fwd(x2, H2, W2, params2))
    ref2 = _reference_forward(x2, H2, W2, gamma2, beta2, w_red2)
    assert out2.shape == (B2, ((H2 + 1) // 2) * ((W2 + 1) // 2), 2 * C2), out2.shape
    assert jnp.allclose(out2, ref2, atol=3e-2, rtol=3e-2), \
        float(jnp.max(jnp.abs(out2 - ref2)))

    print("KERNEL_OK")
</pallas_src>

<mosaic_0001>
module attributes {stable_mosaic.version = 11 : i64} {
  func.func @_fused_merge_kernel(%arg0: i32, %arg1: memref<8x2x8x128xf32, #tpu.memory_space<vmem>>, %arg2: memref<128x128xbf16, #tpu.memory_space<vmem>>, %arg3: memref<128x128xbf16, #tpu.memory_space<vmem>>, %arg4: memref<1x128xf32, #tpu.memory_space<vmem>>, %arg5: memref<64x128xf32, #tpu.memory_space<vmem>>) attributes {dimension_semantics = [#tpu.dimension_semantics<parallel>], iteration_bounds = array<i64: 2>, scalar_prefetch = 0 : i64, scratch_operands = 0 : i64, tpu.core_type = #tpu.core_type<tc>, window_params = [{transform_indices = @transform_0, window_bounds = array<i64: 8, 2, 8, 128>}, {pipeline_mode = #tpu.pipeline_mode<synchronous>, transform_indices = @transform_1, window_bounds = array<i64: 128, 128>}, {pipeline_mode = #tpu.pipeline_mode<synchronous>, transform_indices = @transform_2, window_bounds = array<i64: 128, 128>}, {pipeline_mode = #tpu.pipeline_mode<synchronous>, transform_indices = @transform_3, window_bounds = array<i64: 1, 128>}, {transform_indices = @transform_4, window_bounds = array<i64: 64, 128>}]} {
    %c0 = arith.constant 0 : index
    %c0_0 = arith.constant 0 : index
    %c0_1 = arith.constant 0 : index
    %c0_2 = arith.constant 0 : index
    %0 = vector.load %arg1[%c0, %c0_0, %c0_1, %c0_2] : memref<8x2x8x128xf32, #tpu.memory_space<vmem>>, vector<8x2x8x128xf32>
    %1 = vector.extract_strided_slice %0 {offsets = [0, 0, 0, 0], sizes = [8, 1, 8, 128], strides = [1, 1, 1, 1]} : vector<8x2x8x128xf32> to vector<8x1x8x128xf32>
    %2 = vector.shape_cast %1 : vector<8x1x8x128xf32> to vector<8x8x128xf32>
    %3 = vector.extract_strided_slice %0 {offsets = [0, 1, 0, 0], sizes = [8, 1, 8, 128], strides = [1, 1, 1, 1]} : vector<8x2x8x128xf32> to vector<8x1x8x128xf32>
    %4 = vector.shape_cast %3 : vector<8x1x8x128xf32> to vector<8x8x128xf32>
    %cst = arith.constant dense<0.000000e+00> : vector<8x8xf32>
    %5 = vector.multi_reduction <add>, %2, %cst [2] : vector<8x8x128xf32> to vector<8x8xf32>
    %6 = vector.shape_cast %5 : vector<8x8xf32> to vector<8x8x1xf32>
    %cst_3 = arith.constant dense<0.000000e+00> : vector<8x8xf32>
    %7 = vector.multi_reduction <add>, %4, %cst_3 [2] : vector<8x8x128xf32> to vector<8x8xf32>
    %8 = vector.shape_cast %7 : vector<8x8xf32> to vector<8x8x1xf32>
    %9 = arith.addf %6, %8 : vector<8x8x1xf32>
    %cst_4 = arith.constant 3.906250e-03 : f32
    %10 = vector.broadcast %cst_4 : f32 to vector<8x8x1xf32>
    %11 = arith.mulf %9, %10 : vector<8x8x1xf32>
    %12 = vector.broadcast %11 : vector<8x8x1xf32> to vector<8x8x128xf32>
    %13 = arith.subf %2, %12 : vector<8x8x128xf32>
    %14 = vector.broadcast %11 : vector<8x8x1xf32> to vector<8x8x128xf32>
    %15 = arith.subf %4, %14 : vector<8x8x128xf32>
    %16 = arith.mulf %13, %13 : vector<8x8x128xf32>
    %cst_5 = arith.constant dense<0.000000e+00> : vector<8x8xf32>
    %17 = vector.multi_reduction <add>, %16, %cst_5 [2] : vector<8x8x128xf32> to vector<8x8xf32>
    %18 = vector.shape_cast %17 : vector<8x8xf32> to vector<8x8x1xf32>
    %19 = arith.mulf %15, %15 : vector<8x8x128xf32>
    %cst_6 = arith.constant dense<0.000000e+00> : vector<8x8xf32>
    %20 = vector.multi_reduction <add>, %19, %cst_6 [2] : vector<8x8x128xf32> to vector<8x8xf32>
    %21 = vector.shape_cast %20 : vector<8x8xf32> to vector<8x8x1xf32>
    %22 = arith.addf %18, %21 : vector<8x8x1xf32>
    %cst_7 = arith.constant 3.906250e-03 : f32
    %23 = vector.broadcast %cst_7 : f32 to vector<8x8x1xf32>
    %24 = arith.mulf %22, %23 : vector<8x8x1xf32>
    %cst_8 = arith.constant 9.99999974E-6 : f32
    %25 = vector.broadcast %cst_8 : f32 to vector<8x8x1xf32>
    %26 = arith.addf %24, %25 : vector<8x8x1xf32>
    %27 = math.rsqrt %26 : vector<8x8x1xf32>
    %28 = vector.shape_cast %13 : vector<8x8x128xf32> to vector<64x128xf32>
    %29 = arith.truncf %28 : vector<64x128xf32> to vector<64x128xbf16>
    %30 = vector.shape_cast %15 : vector<8x8x128xf32> to vector<64x128xf32>
    %31 = arith.truncf %30 : vector<64x128xf32> to vector<64x128xbf16>
    %c0_9 = arith.constant 0 : index
    %c0_10 = arith.constant 0 : index
    %32 = vector.load %arg2[%c0_9, %c0_10] : memref<128x128xbf16, #tpu.memory_space<vmem>>, vector<128x128xbf16>
    %cst_11 = arith.constant dense<0.000000e+00> : vector<64x128xf32>
    %33 = tpu.matmul %29, %32, %cst_11 {dimension_numbers = #tpu.dot_dimension_numbers<[1], [0], [0], [1], [0, 0, 1, 1], [], []>} : vector<64x128xbf16>, vector<128x128xbf16>, vector<64x128xf32> -> vector<64x128xf32>
    %c0_12 = arith.constant 0 : index
    %c0_13 = arith.constant 0 : index
    %34 = vector.load %arg3[%c0_12, %c0_13] : memref<128x128xbf16, #tpu.memory_space<vmem>>, vector<128x128xbf16>
    %cst_14 = arith.constant dense<0.000000e+00> : vector<64x128xf32>
    %35 = tpu.matmul %31, %34, %cst_14 {dimension_numbers = #tpu.dot_dimension_numbers<[1], [0], [0], [1], [0, 0, 1, 1], [], []>} : vector<64x128xbf16>, vector<128x128xbf16>, vector<64x128xf32> -> vector<64x128xf32>
    %36 = arith.addf %33, %35 : vector<64x128xf32>
    %37 = vector.shape_cast %27 : vector<8x8x1xf32> to vector<64x1xf32>
    %38 = vector.broadcast %37 : vector<64x1xf32> to vector<64x128xf32>
    %39 = arith.mulf %36, %38 : vector<64x128xf32>
    %c0_15 = arith.constant 0 : index
    %c0_16 = arith.constant 0 : index
    %40 = vector.load %arg4[%c0_15, %c0_16] : memref<1x128xf32, #tpu.memory_space<vmem>>, vector<1x128xf32>
    %41 = vector.broadcast %40 : vector<1x128xf32> to vector<64x128xf32>
    %42 = arith.addf %39, %41 : vector<64x128xf32>
    %c0_17 = arith.constant 0 : index
    %c0_18 = arith.constant 0 : index
    %43 = vector.load %arg5[%c0_17, %c0_18] : memref<64x128xf32, #tpu.memory_space<vmem>>, vector<64x128xf32>
    tpu.vector_store %arg5[%c0_17, %c0_18], %42 {strides = array<i32>} : memref<64x128xf32, #tpu.memory_space<vmem>>, vector<64x128xf32>,
    return
  }
  func.func @transform_0(%arg0: i32) -> (i32, i32, i32, i32) {
    %c0_i32 = arith.constant 0 : i32
    %c0_i32_0 = arith.constant 0 : i32
    %c0_i32_1 = arith.constant 0 : i32
    %c0_i32_2 = arith.constant 0 : i32
    return %arg0, %c0_i32, %c0_i32_0, %c0_i32_1 : i32, i32, i32, i32
  }
  func.func @transform_1(%arg0: i32) -> (i32, i32) {
    %c0_i32 = arith.constant 0 : i32
    %c0_i32_0 = arith.constant 0 : i32
    %c0_i32_1 = arith.constant 0 : i32
    return %c0_i32, %c0_i32_0 : i32, i32
  }
  func.func @transform_2(%arg0: i32) -> (i32, i32) {
    %c0_i32 = arith.constant 0 : i32
    %c0_i32_0 = arith.constant 0 : i32
    %c0_i32_1 = arith.constant 0 : i32
    return %c0_i32, %c0_i32_0 : i32, i32
  }
  func.func @transform_3(%arg0: i32) -> (i32, i32) {
    %c0_i32 = arith.constant 0 : i32
    %c0_i32_0 = arith.constant 0 : i32
    %c0_i32_1 = arith.constant 0 : i32
    return %c0_i32, %c0_i32_0 : i32, i32
  }
  func.func @transform_4(%arg0: i32) -> (i32, i32) {
    %c0_i32 = arith.constant 0 : i32
    %c0_i32_0 = arith.constant 0 : i32
    return %arg0, %c0_i32 : i32, i32
  }
}

</mosaic_0001>

<llo_original>
// kernel: patch_merging_forward.1
$region0: #{patch_merging_forward.1}
  #allocation0 [shape = 'u32[]', space=smem, size = 0x4, offset = 0x4, fixed_abs, tag = 'smem constant byte address 0x4 - core index']
  #allocation1 [shape = 'u32[72,128]{1,0:T(1,128)}', space=vmem, size = 0x9000, scoped, tag = 'internal scratch']
  %s0 = inlined_call_operand.vmem [shape: f32[16,2,8,128], index: 0, kind: input, shape index: {}]
  %s1 = inlined_call_operand.vmem [shape: bf16[128,128], index: 1, kind: input, shape index: {}]
  %s2 = inlined_call_operand.vmem [shape: bf16[128,128], index: 2, kind: input, shape index: {}]
  %s3 = inlined_call_operand.vmem [shape: f32[1,128], index: 3, kind: input, shape index: {}]
  %s4 = inlined_call_operand.hbm [shape: f32[128,128], index: 4, kind: output, shape index: {}]
  %s5 = sld [smem:[#allocation0]]
  $region49: #{patch_merging_forward.1} parent=0
    _
  %s7 = ssub.s32 1, %s5
  %s8 = scalar_select 0, %s7, %s5
  $region1: #{patch_merging_forward.1} parent=0
    #allocation2 [shape = 'u8[65536]{0}', space=vmem, size = 0x10000, scoped, tag = 'output window, operand 0']
    #allocation3 [shape = 's32[2]{0}', space=sflag, size = 0x8, scoped, tag = 'scoped memory for patch_merging_forward.1']
    %9 = vsyncpa [#allocation3], 0
    %s10 = scalar_lea.sflag [#allocation3], 1
    %11 = vsyncpa %s10, 0
    loop: start=0, step=1, limit=4
    $region2: #{patch_merging_forward.1} parent=1 // loop_pre_header
      _
    $region3: #{patch_merging_forward.1} parent=1 // loop_header
      %s13 = sphi 0, %s17
      %p14 = scmp.ge.s32.totalorder %s13, 4
      %s23 = sphi 0, %s25
      %s26 = sphi 0, %s23
      %s27 = sphi 0, %s26
      %s43 = sphi 0, %s27
      %s47 = sphi 0, %s47
      %s49 = sphi 0, %s47
      %s50 = sphi 0, %s49
      %s64 = sphi 0, %s50
      %s68 = sphi 0, %s68
      %s70 = sphi 0, %s68
      %s71 = sphi 0, %s70
      %s85 = sphi 0, %s71
      %s89 = sphi 0, %s89
      %s91 = sphi 0, %s89
      %s92 = sphi 0, %s91
      %s106 = sphi 0, %s92
      %s112 = sphi 0, %s114
      %s115 = sphi 0, %s112
      %s116 = sphi 0, %s115
      %s132 = sphi 0, %s116
    $region4: #{patch_merging_forward.1} parent=1 // loop_header_branch
      %16 = sbr.rel (%p14) target = $region8
    $region5: #{patch_merging_forward.1} parent=1 // loop_body
      %s18 = ssub.s32 %s13, 1
      %s19 = ssub.s32 %s13, 2
      %s20 = sadd.s32 %s13, 1
      %s21 = ssub.s32 %s13, %s20
      %p22 = scmp.eq.s32.totalorder %s21, 0
      %s24 = sadd.s32 %s23, 1
      %s25 = scalar_select %p22, %s23, %s24
      %p28 = pneg %p22
      %p29 = scmp.eq.s32.totalorder %s13, 1
      %p30 = por %p28, %p29
      %p31 = scmp.ne.s32.totalorder %s23, %s26
      %p32 = scmp.eq.s32.totalorder %s13, 0
      %p33 = por %p31, %p32
      %p34 = scmp.ne.s32.totalorder %s23, %s26
      %p35 = scmp.eq.s32.totalorder %s18, 1
      %p36 = por %p34, %p35
      %p37 = scmp.ne.s32.totalorder %s26, %s27
      %p38 = scmp.eq.s32.totalorder %s18, 0
      %p39 = por %p37, %p38
      %p40 = scmp.ne.s32.totalorder %s26, %s27
      %p41 = scmp.eq.s32.totalorder %s19, 1
      %p42 = por %p40, %p41
      %p44 = scmp.ne.s32.totalorder %s27, %s43
      %p45 = scmp.eq.s32.totalorder %s19, 0
      %p46 = por %p44, %p45
      %s48 = sadd.s32 %s47, 1
      %p51 = scmp.eq.s32.totalorder %s13, 1
      %p52 = scmp.ne.s32.totalorder %s47, %s49
      %p53 = scmp.eq.s32.totalorder %s13, 0
      %p54 = por %p52, %p53
      %p55 = scmp.ne.s32.totalorder %s47, %s49
      %p56 = scmp.eq.s32.totalorder %s18, 1
      %p57 = por %p55, %p56
      %p58 = scmp.ne.s32.totalorder %s49, %s50
      %p59 = scmp.eq.s32.totalorder %s18, 0
      %p60 = por %p58, %p59
      %p61 = scmp.ne.s32.totalorder %s49, %s50
      %p62 = scmp.eq.s32.totalorder %s19, 1
      %p63 = por %p61, %p62
      %p65 = scmp.ne.s32.totalorder %s50, %s64
      %p66 = scmp.eq.s32.totalorder %s19, 0
      %p67 = por %p65, %p66
      %s69 = sadd.s32 %s68, 1
      %p72 = scmp.eq.s32.totalorder %s13, 1
      %p73 = scmp.ne.s32.totalorder %s68, %s70
      %p74 = scmp.eq.s32.totalorder %s13, 0
      %p75 = por %p73, %p74
      %p76 = scmp.ne.s32.totalorder %s68, %s70
      %p77 = scmp.eq.s32.totalorder %s18, 1
      %p78 = por %p76, %p77
      %p79 = scmp.ne.s32.totalorder %s70, %s71
      %p80 = scmp.eq.s32.totalorder %s18, 0
      %p81 = por %p79, %p80
      %p82 = scmp.ne.s32.totalorder %s70, %s71
      %p83 = scmp.eq.s32.totalorder %s19, 1
      %p84 = por %p82, %p83
      %p86 = scmp.ne.s32.totalorder %s71, %s85
      %p87 = scmp.eq.s32.totalorder %s19, 0
      %p88 = por %p86, %p87
      %s90 = sadd.s32 %s89, 1
      %p93 = scmp.eq.s32.totalorder %s13, 1
      %p94 = scmp.ne.s32.totalorder %s89, %s91
      %p95 = scmp.eq.s32.totalorder %s13, 0
      %p96 = por %p94, %p95
      %p97 = scmp.ne.s32.totalorder %s89, %s91
      %p98 = scmp.eq.s32.totalorder %s18, 1
      %p99 = por %p97, %p98
      %p100 = scmp.ne.s32.totalorder %s91, %s92
      %p101 = scmp.eq.s32.totalorder %s18, 0
      %p102 = por %p100, %p101
      %p103 = scmp.ne.s32.totalorder %s91, %s92
      %p104 = scmp.eq.s32.totalorder %s19, 1
      %p105 = por %p103, %p104
      %p107 = scmp.ne.s32.totalorder %s92, %s106
      %p108 = scmp.eq.s32.totalorder %s19, 0
      %p109 = por %p107, %p108
      %s110 = ssub.s32 %s13, %s20
      %p111 = scmp.eq.s32.totalorder %s110, 0
      %s113 = sadd.s32 %s112, 1
      %s114 = scalar_select %p111, %s112, %s113
      %p117 = pneg %p111
      %p118 = scmp.eq.s32.totalorder %s13, 1
      %p119 = por %p117, %p118
      %p120 = scmp.ne.s32.totalorder %s112, %s115
      %p121 = scmp.eq.s32.totalorder %s13, 0
      %p122 = por %p120, %p121
      %p123 = scmp.ne.s32.totalorder %s112, %s115
      %p124 = scmp.eq.s32.totalorder %s18, 1
      %p125 = por %p123, %p124
      %p126 = scmp.ne.s32.totalorder %s115, %s116
      %p127 = scmp.eq.s32.totalorder %s18, 0
      %p128 = por %p126, %p127
      %p129 = scmp.ne.s32.totalorder %s115, %s116
      %p130 = scmp.eq.s32.totalorder %s19, 1
      %p131 = por %p129, %p130
      %p133 = scmp.ne.s32.totalorder %s116, %s132
      %p134 = scmp.eq.s32.totalorder %s19, 0
      %p135 = por %p133, %p134
      %p136 = scmp.le.s32.totalorder 1, %s13
      %p137 = scmp.lt.s32.totalorder %s13, 3
      %p138 = pnand %p136, %p137
      %p139 = pneg %p138
      // Predicated region
      $region9: #{patch_merging_forward.1} parent=5 // pred_check
        _
      $region10: #{patch_merging_forward.1} parent=5 // pred_check_branch
        %141 = sbr.rel (%p138) target = $region12
      $region11: #{patch_merging_forward.1} parent=5 // pred_region
        %s142 = ssub.s32 %s13, 1
        // Predicated region
        $region13: #{patch_merging_forward.1} parent=11 // pred_check
          %p143 = pneg %p60
        $region14: #{patch_merging_forward.1} parent=11 // pred_check_branch
          %145 = sbr.rel (%p143) target = $region16
        $region15: #{patch_merging_forward.1} parent=11 // pred_region
          _
        $region16: #{patch_merging_forward.1} parent=11 // pred_fallthru
          _
        // Predicated region
        $region17: #{patch_merging_forward.1} parent=11 // pred_check
          %p146 = pneg %p81
        $region18: #{patch_merging_forward.1} parent=11 // pred_check_branch
          %148 = sbr.rel (%p146) target = $region20
        $region19: #{patch_merging_forward.1} parent=11 // pred_region
          _
        $region20: #{patch_merging_forward.1} parent=11 // pred_fallthru
          _
        // Predicated region
        $region21: #{patch_merging_forward.1} parent=11 // pred_check
          %p149 = pneg %p102
        $region22: #{patch_merging_forward.1} parent=11 // pred_check_branch
          %151 = sbr.rel (%p149) target = $region24
        $region23: #{patch_merging_forward.1} parent=11 // pred_region
          _
        $region24: #{patch_merging_forward.1} parent=11 // pred_fallthru
          _
      $region12: #{patch_merging_forward.1} parent=5 // pred_fallthru
        _
      %p152 = scmp.lt.s32.totalorder %s13, 2
      // Predicated region
      $region25: #{patch_merging_forward.1} parent=5 // pred_check
        %p153 = pneg %p152
      $region26: #{patch_merging_forward.1} parent=5 // pred_check_branch
        %155 = sbr.rel (%p153) target = $region28
      $region27: #{patch_merging_forward.1} parent=5 // pred_region
        // Predicated region
        $region29: #{patch_merging_forward.1} parent=27 // pred_check
          %p156 = pneg %p33
        $region30: #{patch_merging_forward.1} parent=27 // pred_check_branch
          %158 = sbr.rel (%p156) target = $region32
        $region31: #{patch_merging_forward.1} parent=27 // pred_region
          %s159 = smul.u32 8, %s13
          %p160 = scmp.lt.s32.totalorder %s159, 15
          %s161 = scalar_select %p160, %s159, 15
          %s162 = smul.addr %s161, 2
          %s163 = smul.addr %s162, 8
          %s164 = scalar_lea.vmem %s0, %s163
          %s165 = smul.u32 8, %s13
        $region32: #{patch_merging_forward.1} parent=27 // pred_fallthru
          _
      $region28: #{patch_merging_forward.1} parent=5 // pred_fallthru
        _
      %p166 = scmp.le.s32.totalorder 1, %s13
      %p167 = scmp.lt.s32.totalorder %s13, 3
      %p168 = pnand %p166, %p167
      %p169 = pneg %p168
      // Predicated region
      $region33: #{patch_merging_forward.1} parent=5 // pred_check
        _
      $region34: #{patch_merging_forward.1} parent=5 // pred_check_branch
        %171 = sbr.rel (%p168) target = $region36
      $region35: #{patch_merging_forward.1} parent=5 // pred_region
        %s172 = ssub.s32 %s13, 1
        %s173 = smul.u32 8, %s18
        %p174 = scmp.lt.s32.totalorder %s173, 15
        %s175 = scalar_select %p174, %s173, 15
        %s176 = smul.addr %s175, 2
        %s177 = smul.addr %s176, 8
        %s178 = scalar_lea.vmem %s0, %s177
        %p179 = pneg %p39
        %p180 = pneg %p36
        %p181 = pneg %p60
        %p182 = pneg %p57
        %p183 = pneg %p81
        %p184 = pneg %p78
        %p185 = pneg %p102
        %p186 = pneg %p99
        %p187 = pneg %p128
        %p188 = pneg %p125
        %s189 = sand.u32 %s115, 1
        %s190 = scalar_lea.sflag [#allocation3], %s189
        %s191 = sand.u32 %s115, 1
        %s192 = smul.addr %s191, 64
        %s193 = scalar_lea.vmem [#allocation2], %s192
        %s194 = smul.u32 8, %s18
        %p195 = scmp.lt.s32.totalorder %s194, 15
        %s196 = scalar_select %p195, %s194, 15
        %s197 = smul.addr %s196, 2
        %s198 = smul.addr %s197, 8
        %s199 = scalar_lea.vmem %s0, %s198
        %s200 = smul.u32 8, %s18
        %s201 = smul.u32 8, %s18
        %v202 = vld [vmem:[%s199] sm:$0xff]
        %v203 = vld [vmem:[%s199 + $0x8] sm:$0xff]
        %v204 = vld [vmem:[%s199 + $0x10] sm:$0xff]
        %v205 = vld [vmem:[%s199 + $0x18] sm:$0xff]
        %v206 = vld [vmem:[%s199 + $0x20] sm:$0xff]
        %v207 = vld [vmem:[%s199 + $0x28] sm:$0xff]
        %v208 = vld [vmem:[%s199 + $0x30] sm:$0xff]
        %v209 = vld [vmem:[%s199 + $0x38] sm:$0xff]
        %v210 = vld [vmem:[%s199 + $0x40] sm:$0xff]
        %v211 = vld [vmem:[%s199 + $0x48] sm:$0xff]
        %v212 = vld [vmem:[%s199 + $0x50] sm:$0xff]
        %v213 = vld [vmem:[%s199 + $0x58] sm:$0xff]
        %v214 = vld [vmem:[%s199 + $0x60] sm:$0xff]
        %v215 = vld [vmem:[%s199 + $0x68] sm:$0xff]
        %v216 = vld [vmem:[%s199 + $0x70] sm:$0xff]
        %v217 = vld [vmem:[%s199 + $0x78] sm:$0xff]
        %218 = vadd.xlane.f32.xlu0 %v202
        %v219 = vpop.xlane.xlu0 %218
        %220 = vadd.xlane.f32.xlu0 %v204
        %v221 = vpop.xlane.xlu0 %220
        %222 = vadd.xlane.f32.xlu0 %v206
        %v223 = vpop.xlane.xlu0 %222
        %224 = vadd.xlane.f32.xlu0 %v208
        %v225 = vpop.xlane.xlu0 %224
        %226 = vadd.xlane.f32.xlu0 %v210
        %v227 = vpop.xlane.xlu0 %226
        %228 = vadd.xlane.f32.xlu0 %v212
        %v229 = vpop.xlane.xlu0 %228
        %230 = vadd.xlane.f32.xlu0 %v214
        %v231 = vpop.xlane.xlu0 %230
        %232 = vadd.xlane.f32.xlu0 %v216
        %v233 = vpop.xlane.xlu0 %232
        %234 = vadd.xlane.f32.xlu0 %v203
        %v235 = vpop.xlane.xlu0 %234
        %236 = vadd.xlane.f32.xlu0 %v205
        %v237 = vpop.xlane.xlu0 %236
        %238 = vadd.xlane.f32.xlu0 %v207
        %v239 = vpop.xlane.xlu0 %238
        %240 = vadd.xlane.f32.xlu0 %v209
        %v241 = vpop.xlane.xlu0 %240
        %242 = vadd.xlane.f32.xlu0 %v211
        %v243 = vpop.xlane.xlu0 %242
        %244 = vadd.xlane.f32.xlu0 %v213
        %v245 = vpop.xlane.xlu0 %244
        %246 = vadd.xlane.f32.xlu0 %v215
        %v247 = vpop.xlane.xlu0 %246
        %248 = vadd.xlane.f32.xlu0 %v217
        %v249 = vpop.xlane.xlu0 %248
        %v250 = vadd.f32 %v219, %v235
        %v251 = vadd.f32 %v221, %v237
        %v252 = vadd.f32 %v223, %v239
        %v253 = vadd.f32 %v225, %v241
        %v254 = vadd.f32 %v227, %v243
        %v255 = vadd.f32 %v229, %v245
        %v256 = vadd.f32 %v231, %v247
        %v257 = vadd.f32 %v233, %v249
        %v258 = vmul.f32 %v250, 0.00390625
        %v259 = vmul.f32 %v251, 0.00390625
        %v260 = vmul.f32 %v252, 0.00390625
        %v261 = vmul.f32 %v253, 0.00390625
        %v262 = vmul.f32 %v254, 0.00390625
        %v263 = vmul.f32 %v255, 0.00390625
        %v264 = vmul.f32 %v256, 0.00390625
        %v265 = vmul.f32 %v257, 0.00390625
        %v266 = vsub.f32 %v202, %v258
        %v267 = vsub.f32 %v204, %v259
        %v268 = vsub.f32 %v206, %v260
        %v269 = vsub.f32 %v208, %v261
        %v270 = vsub.f32 %v210, %v262
        %v271 = vsub.f32 %v212, %v263
        %v272 = vsub.f32 %v214, %v264
        %v273 = vsub.f32 %v216, %v265
        %v274 = vsub.f32 %v203, %v258
        %v275 = vsub.f32 %v205, %v259
        %v276 = vsub.f32 %v207, %v260
        %v277 = vsub.f32 %v209, %v261
        %v278 = vsub.f32 %v211, %v262
        %v279 = vsub.f32 %v213, %v263
        %v280 = vsub.f32 %v215, %v264
        %v281 = vsub.f32 %v217, %v265
        %v282 = vmul.f32 %v266, %v266
        %v283 = vmul.f32 %v267, %v267
        %v284 = vmul.f32 %v268, %v268
        %v285 = vmul.f32 %v269, %v269
        %v286 = vmul.f32 %v270, %v270
        %v287 = vmul.f32 %v271, %v271
        %v288 = vmul.f32 %v272, %v272
        %v289 = vmul.f32 %v273, %v273
        %290 = vadd.xlane.f32.xlu0 %v282
        %v291 = vpop.xlane.xlu0 %290
        %292 = vadd.xlane.f32.xlu0 %v283
        %v293 = vpop.xlane.xlu0 %292
        %294 = vadd.xlane.f32.xlu0 %v284
        %v295 = vpop.xlane.xlu0 %294
        %296 = vadd.xlane.f32.xlu0 %v285
        %v297 = vpop.xlane.xlu0 %296
        %298 = vadd.xlane.f32.xlu0 %v286
        %v299 = vpop.xlane.xlu0 %298
        %300 = vadd.xlane.f32.xlu0 %v287
        %v301 = vpop.xlane.xlu0 %300
        %302 = vadd.xlane.f32.xlu0 %v288
        %v303 = vpop.xlane.xlu0 %302
        %304 = vadd.xlane.f32.xlu0 %v289
        %v305 = vpop.xlane.xlu0 %304
        %v306 = vmul.f32 %v274, %v274
        %v307 = vmul.f32 %v275, %v275
        %v308 = vmul.f32 %v276, %v276
        %v309 = vmul.f32 %v277, %v277
        %v310 = vmul.f32 %v278, %v278
        %v311 = vmul.f32 %v279, %v279
        %v312 = vmul.f32 %v280, %v280
        %v313 = vmul.f32 %v281, %v281
        %314 = vadd.xlane.f32.xlu0 %v306
        %v315 = vpop.xlane.xlu0 %314
        %316 = vadd.xlane.f32.xlu0 %v307
        %v317 = vpop.xlane.xlu0 %316
        %318 = vadd.xlane.f32.xlu0 %v308
        %v319 = vpop.xlane.xlu0 %318
        %320 = vadd.xlane.f32.xlu0 %v309
        %v321 = vpop.xlane.xlu0 %320
        %322 = vadd.xlane.f32.xlu0 %v310
        %v323 = vpop.xlane.xlu0 %322
        %324 = vadd.xlane.f32.xlu0 %v311
        %v325 = vpop.xlane.xlu0 %324
        %326 = vadd.xlane.f32.xlu0 %v312
        %v327 = vpop.xlane.xlu0 %326
        %328 = vadd.xlane.f32.xlu0 %v313
        %v329 = vpop.xlane.xlu0 %328
        %v330 = vadd.f32 %v291, %v315
        %v331 = vadd.f32 %v293, %v317
        %v332 = vadd.f32 %v295, %v319
        %v333 = vadd.f32 %v297, %v321
        %v334 = vadd.f32 %v299, %v323
        %v335 = vadd.f32 %v301, %v325
        %v336 = vadd.f32 %v303, %v327
        %v337 = vadd.f32 %v305, %v329
        %v338 = vmul.f32 %v330, 0.00390625
        %v339 = vmul.f32 %v331, 0.00390625
        %v340 = vmul.f32 %v332, 0.00390625
        %v341 = vmul.f32 %v333, 0.00390625
        %v342 = vmul.f32 %v334, 0.00390625
        %v343 = vmul.f32 %v335, 0.00390625
        %v344 = vmul.f32 %v336, 0.00390625
        %v345 = vmul.f32 %v337, 0.00390625
        %v346 = vadd.f32 %v338, 1e-05
        %v347 = vadd.f32 %v339, 1e-05
        %v348 = vadd.f32 %v340, 1e-05
        %v349 = vadd.f32 %v341, 1e-05
        %v350 = vadd.f32 %v342, 1e-05
        %v351 = vadd.f32 %v343, 1e-05
        %v352 = vadd.f32 %v344, 1e-05
        %v353 = vadd.f32 %v345, 1e-05
        %v354 = vrsqrt.pop %v346
        %v355 = vmul.f32 %v354, %v346
        %v356 = vmul.f32 %v355, %v354
        %v357 = vmul.f32 0.5, %v356
        %v358 = vsub.f32 1.5, %v357
        %v359 = vmul.f32 %v354, %v358
        %vm360 = vweird.f32 %v346
        %vm361 = vweird.f32 %v354
        %vm362 = vmor %vm360, %vm361
        %v363 = vsel %vm362, %v354, %v359
        %v364 = vrsqrt.pop %v347
        %v365 = vmul.f32 %v364, %v347
        %v366 = vmul.f32 %v365, %v364
        %v367 = vmul.f32 0.5, %v366
        %v368 = vsub.f32 1.5, %v367
        %v369 = vmul.f32 %v364, %v368
        %vm370 = vweird.f32 %v347
        %vm371 = vweird.f32 %v364
        %vm372 = vmor %vm370, %vm371
        %v373 = vsel %vm372, %v364, %v369
        %v374 = vrsqrt.pop %v348
        %v375 = vmul.f32 %v374, %v348
        %v376 = vmul.f32 %v375, %v374
        %v377 = vmul.f32 0.5, %v376
        %v378 = vsub.f32 1.5, %v377
        %v379 = vmul.f32 %v374, %v378
        %vm380 = vweird.f32 %v348
        %vm381 = vweird.f32 %v374
        %vm382 = vmor %vm380, %vm381
        %v383 = vsel %vm382, %v374, %v379
        %v384 = vrsqrt.pop %v349
        %v385 = vmul.f32 %v384, %v349
        %v386 = vmul.f32 %v385, %v384
        %v387 = vmul.f32 0.5, %v386
        %v388 = vsub.f32 1.5, %v387
        %v389 = vmul.f32 %v384, %v388
        %vm390 = vweird.f32 %v349
        %vm391 = vweird.f32 %v384
        %vm392 = vmor %vm390, %vm391
        %v393 = vsel %vm392, %v384, %v389
        %v394 = vrsqrt.pop %v350
        %v395 = vmul.f32 %v394, %v350
        %v396 = vmul.f32 %v395, %v394
        %v397 = vmul.f32 0.5, %v396
        %v398 = vsub.f32 1.5, %v397
        %v399 = vmul.f32 %v394, %v398
        %vm400 = vweird.f32 %v350
        %vm401 = vweird.f32 %v394
        %vm402 = vmor %vm400, %vm401
        %v403 = vsel %vm402, %v394, %v399
        %v404 = vrsqrt.pop %v351
        %v405 = vmul.f32 %v404, %v351
        %v406 = vmul.f32 %v405, %v404
        %v407 = vmul.f32 0.5, %v406
        %v408 = vsub.f32 1.5, %v407
        %v409 = vmul.f32 %v404, %v408
        %vm410 = vweird.f32 %v351
        %vm411 = vweird.f32 %v404
        %vm412 = vmor %vm410, %vm411
        %v413 = vsel %vm412, %v404, %v409
        %v414 = vrsqrt.pop %v352
        %v415 = vmul.f32 %v414, %v352
        %v416 = vmul.f32 %v415, %v414
        %v417 = vmul.f32 0.5, %v416
        %v418 = vsub.f32 1.5, %v417
        %v419 = vmul.f32 %v414, %v418
        %vm420 = vweird.f32 %v352
        %vm421 = vweird.f32 %v414
        %vm422 = vmor %vm420, %vm421
        %v423 = vsel %vm422, %v414, %v419
        %v424 = vrsqrt.pop %v353
        %v425 = vmul.f32 %v424, %v353
        %v426 = vmul.f32 %v425, %v424
        %v427 = vmul.f32 0.5, %v426
        %v428 = vsub.f32 1.5, %v427
        %v429 = vmul.f32 %v424, %v428
        %vm430 = vweird.f32 %v353
        %vm431 = vweird.f32 %v424
        %vm432 = vmor %vm430, %vm431
        %v433 = vsel %vm432, %v424, %v429
        %v434 = vpack.c.bf16 %v267, %v266
        %v435 = vpack.c.bf16 %v269, %v268
        %v436 = vpack.c.bf16 %v271, %v270
        %v437 = vpack.c.bf16 %v273, %v272
        %v438 = vpack.c.bf16 %v275, %v274
        %v439 = vpack.c.bf16 %v277, %v276
        %v440 = vpack.c.bf16 %v279, %v278
        %v441 = vpack.c.bf16 %v281, %v280
        %v442 = vld [vmem:[%s1] sm:$0xf]
        %v443 = vld [vmem:[%s1 + $0x4] sm:$0xf]
        %v444 = vld [vmem:[%s1 + $0x8] sm:$0xf]
        %v445 = vld [vmem:[%s1 + $0xc] sm:$0xf]
        %v446 = vld [vmem:[%s1 + $0x10] sm:$0xf]
        %v447 = vld [vmem:[%s1 + $0x14] sm:$0xf]
        %v448 = vld [vmem:[%s1 + $0x18] sm:$0xf]
        %v449 = vld [vmem:[%s1 + $0x1c] sm:$0xf]
        %v450 = vld [vmem:[%s1 + $0x20] sm:$0xf]
        %v451 = vld [vmem:[%s1 + $0x24] sm:$0xf]
        %v452 = vld [vmem:[%s1 + $0x28] sm:$0xf]
        %v453 = vld [vmem:[%s1 + $0x2c] sm:$0xf]
        %v454 = vld [vmem:[%s1 + $0x30] sm:$0xf]
        %v455 = vld [vmem:[%s1 + $0x34] sm:$0xf]
        %v456 = vld [vmem:[%s1 + $0x38] sm:$0xf]
        %v457 = vld [vmem:[%s1 + $0x3c] sm:$0xf]
        %v458 = vld [vmem:[%s2] sm:$0xf]
        %v459 = vld [vmem:[%s2 + $0x4] sm:$0xf]
        %v460 = vld [vmem:[%s2 + $0x8] sm:$0xf]
        %v461 = vld [vmem:[%s2 + $0xc] sm:$0xf]
        %v462 = vld [vmem:[%s2 + $0x10] sm:$0xf]
        %v463 = vld [vmem:[%s2 + $0x14] sm:$0xf]
        %v464 = vld [vmem:[%s2 + $0x18] sm:$0xf]
        %v465 = vld [vmem:[%s2 + $0x1c] sm:$0xf]
        %v466 = vld [vmem:[%s2 + $0x20] sm:$0xf]
        %v467 = vld [vmem:[%s2 + $0x24] sm:$0xf]
        %v468 = vld [vmem:[%s2 + $0x28] sm:$0xf]
        %v469 = vld [vmem:[%s2 + $0x2c] sm:$0xf]
        %v470 = vld [vmem:[%s2 + $0x30] sm:$0xf]
        %v471 = vld [vmem:[%s2 + $0x34] sm:$0xf]
        %v472 = vld [vmem:[%s2 + $0x38] sm:$0xf]
        %v473 = vld [vmem:[%s2 + $0x3c] sm:$0xf]
        %v490 = vunpack.c.l.b16 %v458
        %v491 = vunpack.c.l.b16 %v459
        %v492 = vunpack.c.l.b16 %v460
        %v493 = vunpack.c.l.b16 %v461
        %v494 = vunpack.c.l.b16 %v462
        %v495 = vunpack.c.l.b16 %v463
        %v496 = vunpack.c.l.b16 %v464
        %v497 = vunpack.c.l.b16 %v465
        %v498 = vunpack.c.l.b16 %v466
        %v499 = vunpack.c.l.b16 %v467
        %v500 = vunpack.c.l.b16 %v468
        %v501 = vunpack.c.l.b16 %v469
        %v502 = vunpack.c.l.b16 %v470
        %v503 = vunpack.c.l.b16 %v471
        %v504 = vunpack.c.l.b16 %v472
        %v505 = vunpack.c.l.b16 %v473
        %v506 = vpack.c.b16 %v491, %v490
        %v507 = vpack.c.b16 %v493, %v492
        %v508 = vpack.c.b16 %v495, %v494
        %v509 = vpack.c.b16 %v497, %v496
        %v510 = vpack.c.b16 %v499, %v498
        %v511 = vpack.c.b16 %v501, %v500
        %v512 = vpack.c.b16 %v503, %v502
        %v513 = vpack.c.b16 %v505, %v504
        %522 = vmatpush.bf16.msra.mxu0 %v513
        %523 = vmatpush.bf16.msra.mxu0 %v512
        %524 = vmatpush.bf16.msra.mxu0 %v511
        %525 = vmatpush.bf16.msra.mxu0 %v510
        %526 = vmatpush.bf16.msra.mxu0 %v509
        %527 = vmatpush.bf16.msra.mxu0 %v508
        %528 = vmatpush.bf16.msra.mxu0 %v507
        %529 = vmatpush.bf16.msra.mxu0 %v506
        %530 = vmatmul.bf16.gmra.mxu0 %v438
        %v531 = vpop.f32.mrf.mxu0
        %v532 = vadd.f32 0.0, %v531
        %v533 = vpop.f32.mrf.mxu0
        %v534 = vadd.f32 0.0, %v533
        %535 = vmatmul.bf16.gmra.mxu0 %v439
        %v536 = vpop.f32.mrf.mxu0
        %v537 = vadd.f32 0.0, %v536
        %v538 = vpop.f32.mrf.mxu0
        %v539 = vadd.f32 0.0, %v538
        %540 = vmatmul.bf16.gmra.mxu0 %v440
        %v541 = vpop.f32.mrf.mxu0
        %v542 = vadd.f32 0.0, %v541
        %v543 = vpop.f32.mrf.mxu0
        %v544 = vadd.f32 0.0, %v543
        %545 = vmatmul.bf16.gmra.mxu0 %v441
        %v546 = vpop.f32.mrf.mxu0
        %v547 = vadd.f32 0.0, %v546
        %v548 = vpop.f32.mrf.mxu0
        %v549 = vadd.f32 0.0, %v548
        %550 = vdwg.mxu0
        %v567 = vunpack.c.l.b16 %v442
        %v568 = vunpack.c.l.b16 %v443
        %v569 = vunpack.c.l.b16 %v444
        %v570 = vunpack.c.l.b16 %v445
        %v571 = vunpack.c.l.b16 %v446
        %v572 = vunpack.c.l.b16 %v447
        %v573 = vunpack.c.l.b16 %v448
        %v574 = vunpack.c.l.b16 %v449
        %v575 = vunpack.c.l.b16 %v450
        %v576 = vunpack.c.l.b16 %v451
        %v577 = vunpack.c.l.b16 %v452
        %v578 = vunpack.c.l.b16 %v453
        %v579 = vunpack.c.l.b16 %v454
        %v580 = vunpack.c.l.b16 %v455
        %v581 = vunpack.c.l.b16 %v456
        %v582 = vunpack.c.l.b16 %v457
        %v583 = vpack.c.b16 %v568, %v567
        %v584 = vpack.c.b16 %v570, %v569
        %v585 = vpack.c.b16 %v572, %v571
        %v586 = vpack.c.b16 %v574, %v573
        %v587 = vpack.c.b16 %v576, %v575
        %v588 = vpack.c.b16 %v578, %v577
        %v589 = vpack.c.b16 %v580, %v579
        %v590 = vpack.c.b16 %v582, %v581
        %599 = vmatpush.bf16.msra.mxu0 %v590
        %600 = vmatpush.bf16.msra.mxu0 %v589
        %601 = vmatpush.bf16.msra.mxu0 %v588
        %602 = vmatpush.bf16.msra.mxu0 %v587
        %603 = vmatpush.bf16.msra.mxu0 %v586
        %604 = vmatpush.bf16.msra.mxu0 %v585
        %605 = vmatpush.bf16.msra.mxu0 %v584
        %606 = vmatpush.bf16.msra.mxu0 %v583
        %607 = vmatmul.bf16.gmra.mxu0 %v434
        %v608 = vpop.f32.mrf.mxu0
        %v609 = vadd.f32 %v532, %v608
        %v610 = vpop.f32.mrf.mxu0
        %v611 = vadd.f32 %v534, %v610
        %612 = vmatmul.bf16.gmra.mxu0 %v435
        %v613 = vpop.f32.mrf.mxu0
        %v614 = vadd.f32 %v537, %v613
        %v615 = vpop.f32.mrf.mxu0
        %v616 = vadd.f32 %v539, %v615
        %617 = vmatmul.bf16.gmra.mxu0 %v436
        %v618 = vpop.f32.mrf.mxu0
        %v619 = vadd.f32 %v542, %v618
        %v620 = vpop.f32.mrf.mxu0
        %v621 = vadd.f32 %v544, %v620
        %622 = vmatmul.bf16.gmra.mxu0 %v437
        %v623 = vpop.f32.mrf.mxu0
        %v624 = vadd.f32 %v547, %v623
        %v625 = vpop.f32.mrf.mxu0
        %v626 = vadd.f32 %v549, %v625
        %627 = vdwg.mxu0
        %v628 = vmul.f32 %v609, %v363
        %v629 = vmul.f32 %v611, %v373
        %v630 = vmul.f32 %v614, %v383
        %v631 = vmul.f32 %v616, %v393
        %v632 = vmul.f32 %v619, %v403
        %v633 = vmul.f32 %v621, %v413
        %v634 = vmul.f32 %v624, %v423
        %v635 = vmul.f32 %v626, %v433
        %v636 = vld [vmem:[%s3] sm:$0x1]
        %v638 = vperm.slane %v636, 0
        %v640 = vadd.f32 %v628, %v638
        %v641 = vadd.f32 %v629, %v638
        %v642 = vadd.f32 %v630, %v638
        %v643 = vadd.f32 %v631, %v638
        %v644 = vadd.f32 %v632, %v638
        %v645 = vadd.f32 %v633, %v638
        %v646 = vadd.f32 %v634, %v638
        %v647 = vadd.f32 %v635, %v638
        %648 = vst [vmem:[%s193] sm:$0xff] %v640
        %649 = vst [vmem:[%s193 + $0x8] sm:$0xff] %v641
        %650 = vst [vmem:[%s193 + $0x10] sm:$0xff] %v642
        %651 = vst [vmem:[%s193 + $0x18] sm:$0xff] %v643
        %652 = vst [vmem:[%s193 + $0x20] sm:$0xff] %v644
        %653 = vst [vmem:[%s193 + $0x28] sm:$0xff] %v645
        %654 = vst [vmem:[%s193 + $0x30] sm:$0xff] %v646
        %655 = vst [vmem:[%s193 + $0x38] sm:$0xff] %v647
        %s656 = sand.u32 %s115, 1
        %s657 = scalar_lea.sflag [#allocation3], %s656
        %s658 = sand.u32 %s115, 1
        %s659 = smul.addr %s658, 64
        %s660 = scalar_lea.vmem [#allocation2], %s659
        // Predicated region
        $region37: #{patch_merging_forward.1} parent=35 // pred_check
          %p661 = pneg %p125
        $region38: #{patch_merging_forward.1} parent=35 // pred_check_branch
          %663 = sbr.rel (%p661) target = $region40
        $region39: #{patch_merging_forward.1} parent=35 // pred_region
          %s664 = smul.u32 8, %s18
          %666 = vsyncadd %s657, 0
          %s667 = smul.addr %s664, 8
          %s668 = scalar_lea.hbm %s4, %s667
          %s669 = sshll.u32 %s660, 4
          %s670 = int_to_ptr.vmem [resolvable:$true] %s669
          %s671 = sshll.u32 %s668, 4
          %s672 = int_to_ptr.hbm [resolvable:$true] %s671
          %677 = dma.vmem_to_hbm [thread:$0]  %s670, 1024, %s672, %s657, 128, 128, 8
        $region40: #{patch_merging_forward.1} parent=35 // pred_fallthru
          _
      $region36: #{patch_merging_forward.1} parent=5 // pred_fallthru
        _
      %p678 = scmp.le.s32.totalorder 2, %s13
      // Predicated region
      $region41: #{patch_merging_forward.1} parent=5 // pred_check
        %p679 = pneg %p678
      $region42: #{patch_merging_forward.1} parent=5 // pred_check_branch
        %681 = sbr.rel (%p679) target = $region44
      $region43: #{patch_merging_forward.1} parent=5 // pred_region
        %s682 = ssub.s32 %s13, 2
        // Predicated region
        $region45: #{patch_merging_forward.1} parent=43 // pred_check
          %p683 = pneg %p131
        $region46: #{patch_merging_forward.1} parent=43 // pred_check_branch
          %685 = sbr.rel (%p683) target = $region48
        $region47: #{patch_merging_forward.1} parent=43 // pred_region
          %s686 = sand.u32 %s116, 1
          %s687 = scalar_lea.sflag [#allocation3], %s686
          %s688 = sand.u32 %s116, 1
          %s689 = smul.addr %s688, 64
          %s690 = scalar_lea.vmem [#allocation2], %s689
          %692 = dma.done %s687, 1024
        $region48: #{patch_merging_forward.1} parent=43 // pred_fallthru
          _
      $region44: #{patch_merging_forward.1} parent=5 // pred_fallthru
        _
    $region6: #{patch_merging_forward.1} parent=1 // loop_footer
      %s17 = sadd.s32 1, %s13
    $region7: #{patch_merging_forward.1} parent=1 // loop_footer_branch
      %12 = sbr.rel target = $region3
    $region8: #{patch_merging_forward.1} parent=1 // loop_exit
      _
    %693 = vsyncpa [#allocation3], 1
    %s694 = scalar_lea.sflag [#allocation3], 1
    %695 = vsyncpa %s694, 1

</llo_original>
